<compile_context>
chip_gen: v7x
topology: tpu7x:2x2x1
jax: 0.10.0
libtpu: 0.0.40
codegen_flags: <defaults>
</compile_context>

<pallas_src>
import jax
import jax.numpy as jnp
from jax.experimental import pallas as pl
from jax.experimental.pallas import tpu as pltpu

# ----------------------------- configuration --------------------------------
INP_DIM = 4            # in channels  (module's inp_dim)
OUT_DIM = 32           # out channels (module's out_dim)
KSIZE = 3              # kernel_size (module default)
STRIDE = 1             # module default
PAD = (KSIZE - 1) // 2
IMG = 16               # spatial size of the example input


# -------------------------------- kernel ------------------------------------
def conv_relu_kernel(xcol_ref, w_ref, b_ref, o_ref):
    """Fused conv-as-matmul + bias + ReLU for one batch element.

    xcol_ref : (1, K*K*Cin, H*W)  im2col columns (lane axis = H*W)
    w_ref    : (Cout, K*K*Cin)    folded conv weights, VMEM-resident
    b_ref    : (Cout, 1)          bias, VMEM-resident
    o_ref    : (1, Cout, H*W)     output block (lane-dense store)
    """
    y = jnp.dot(w_ref[...], xcol_ref[0],
                preferred_element_type=jnp.float32)     # single MXU matmul
    o_ref[0] = jnp.maximum(y + b_ref[...], 0.0)         # bias + ReLU fused


# ------------------------------- wrapper -------------------------------------
def conv_forward(params, x):
    """y = ReLU(Conv2d(k=3, s=1, p=1, bias=True)(x));  x is NCHW float32."""
    assert x.shape[1] == INP_DIM, '{} {}'.format(x.shape[1], INP_DIM)
    B, cin, H, W = x.shape
    cout = params["w_mat"].shape[0]
    hw = H * W
    kk_cin = KSIZE * KSIZE * cin

    # im2col (pure data movement, built straight from NCHW -- no layout
    # transpose of the input): rows ordered (ky, kx, cin), cols ordered (h, w).
    x_pad = jnp.pad(x, ((0, 0), (0, 0), (PAD, PAD), (PAD, PAD)))
    taps = [x_pad[:, :, ky:ky + H, kx:kx + W]             # each (B, Cin, H, W)
            for ky in range(KSIZE) for kx in range(KSIZE)]
    xcol = jnp.stack(taps, axis=1).reshape(B, kk_cin, hw)  # (B, 36, 256)

    out = pl.pallas_call(
        conv_relu_kernel,
        out_shape=jax.ShapeDtypeStruct((B, cout, hw), jnp.float32),
        grid=(B,),
        in_specs=[
            pl.BlockSpec((1, kk_cin, hw), lambda b: (b, 0, 0)),
            # Grid-invariant weights/bias: untiled, resident in VMEM
            # (no per-step double-buffered weight DMA).
            pl.BlockSpec(memory_space=pltpu.MemorySpace.VMEM),
            pl.BlockSpec(memory_space=pltpu.MemorySpace.VMEM),
        ],
        out_specs=pl.BlockSpec((1, cout, hw), lambda b: (b, 0, 0)),
        compiler_params=pltpu.CompilerParams(
            dimension_semantics=("parallel",)),   # v7x: one TC per batch elem
    )(xcol, params["w_mat"], params["bias"])

    # (B, Cout, H*W) -> (B, Cout, H, W): contiguous reshape, already NCHW.
    return out.reshape(B, cout, H, W)


conv_forward = jax.jit(conv_forward)   # lets XLA fuse the im2col data movement


# ------------------------- deterministic parameters --------------------------
def init_params(key):
    k_w, k_b = jax.random.split(key)
    fan_in = INP_DIM * KSIZE * KSIZE
    bound = 1.0 / (fan_in ** 0.5)
    # PyTorch Conv2d layout (Cout, Cin, K, K), kaiming-uniform-style init.
    w_torch = jax.random.uniform(k_w, (OUT_DIM, INP_DIM, KSIZE, KSIZE),
                                 jnp.float32, -bound, bound)
    bias = jax.random.uniform(k_b, (OUT_DIM,), jnp.float32, -bound, bound)
    # Folded matmul weight (Cout, K*K*Cin); row ordering (ky, kx, cin) matches
    # the wrapper's im2col row ordering.
    w_mat = jnp.transpose(w_torch, (0, 2, 3, 1)).reshape(
        OUT_DIM, KSIZE * KSIZE * INP_DIM)
    return {
        "w_mat": w_mat,
        "bias": bias.reshape(OUT_DIM, 1),
        "w_torch": w_torch,           # kept only for the reference check below
    }


# --------------------------------- main --------------------------------------
if __name__ == "__main__":
    root = jax.random.PRNGKey(0)
    k_param, k_x = jax.random.split(root)
    params = init_params(k_param)

    B = 2
    x = jax.random.normal(k_x, (B, INP_DIM, IMG, IMG), jnp.float32)   # NCHW

    out = jax.block_until_ready(conv_forward(params, x))
    assert out.shape == (B, OUT_DIM, IMG, IMG), out.shape
    assert bool(jnp.all(jnp.isfinite(out)))

    # Plain-JAX reference (XLA conv) as a numerical sanity check.
    ref = jax.lax.conv_general_dilated(
        x, params["w_torch"], window_strides=(STRIDE, STRIDE),
        padding=((PAD, PAD), (PAD, PAD)),
        dimension_numbers=("NCHW", "OIHW", "NCHW"),
        precision=jax.lax.Precision.HIGHEST)
    ref = jnp.maximum(ref + params["bias"].reshape(1, OUT_DIM, 1, 1), 0.0)
    max_err = float(jnp.max(jnp.abs(out - ref)))
    assert bool(jnp.allclose(out, ref, atol=5e-3, rtol=5e-3)), max_err

    print("KERNEL_OK")
</pallas_src>

<mosaic_0001>
module attributes {stable_mosaic.version = 11 : i64} {
  func.func @conv_relu_kernel(%arg0: i32, %arg1: memref<1x36x256xf32, #tpu.memory_space<vmem>>, %arg2: memref<32x36xf32, #tpu.memory_space<vmem>>, %arg3: memref<32x1xf32, #tpu.memory_space<vmem>>, %arg4: memref<1x32x256xf32, #tpu.memory_space<vmem>>) attributes {dimension_semantics = [#tpu.dimension_semantics<parallel>], iteration_bounds = array<i64: 2>, scalar_prefetch = 0 : i64, scratch_operands = 0 : i64, tpu.core_type = #tpu.core_type<tc>, window_params = [{transform_indices = @transform_0, window_bounds = array<i64: 1, 36, 256>}, {pipeline_mode = #tpu.pipeline_mode<synchronous>, transform_indices = @transform_1, window_bounds = array<i64: 32, 36>}, {pipeline_mode = #tpu.pipeline_mode<synchronous>, transform_indices = @transform_2, window_bounds = array<i64: 32, 1>}, {transform_indices = @transform_3, window_bounds = array<i64: 1, 32, 256>}]} {
    %c0 = arith.constant 0 : index
    %c0_0 = arith.constant 0 : index
    %0 = vector.load %arg2[%c0, %c0_0] : memref<32x36xf32, #tpu.memory_space<vmem>>, vector<32x36xf32>
    %c0_1 = arith.constant 0 : index
    %c0_2 = arith.constant 0 : index
    %c0_3 = arith.constant 0 : index
    %1 = vector.load %arg1[%c0_1, %c0_2, %c0_3] : memref<1x36x256xf32, #tpu.memory_space<vmem>>, vector<1x36x256xf32>
    %2 = vector.shape_cast %1 : vector<1x36x256xf32> to vector<36x256xf32>
    %cst = arith.constant dense<0.000000e+00> : vector<32x256xf32>
    %3 = tpu.matmul %0, %2, %cst {dimension_numbers = #tpu.dot_dimension_numbers<[1], [0], [0], [1], [0, 0, 1, 1], [], []>} : vector<32x36xf32>, vector<36x256xf32>, vector<32x256xf32> -> vector<32x256xf32>
    %c0_4 = arith.constant 0 : index
    %c0_5 = arith.constant 0 : index
    %4 = vector.load %arg3[%c0_4, %c0_5] : memref<32x1xf32, #tpu.memory_space<vmem>>, vector<32x1xf32>
    %5 = vector.broadcast %4 : vector<32x1xf32> to vector<32x256xf32>
    %6 = arith.addf %3, %5 : vector<32x256xf32>
    %cst_6 = arith.constant 0.000000e+00 : f32
    %7 = vector.broadcast %cst_6 : f32 to vector<32x256xf32>
    %8 = arith.maximumf %6, %7 : vector<32x256xf32>
    %c0_7 = arith.constant 0 : index
    %c0_8 = arith.constant 0 : index
    %c0_9 = arith.constant 0 : index
    %9 = vector.load %arg4[%c0_7, %c0_8, %c0_9] : memref<1x32x256xf32, #tpu.memory_space<vmem>>, vector<1x32x256xf32>
    %10 = vector.shape_cast %9 : vector<1x32x256xf32> to vector<32x256xf32>
    %11 = vector.shape_cast %8 : vector<32x256xf32> to vector<1x32x256xf32>
    tpu.vector_store %arg4[%c0_7, %c0_8, %c0_9], %11 {strides = array<i32>} : memref<1x32x256xf32, #tpu.memory_space<vmem>>, vector<1x32x256xf32>,
    return
  }
  func.func @transform_0(%arg0: i32) -> (i32, i32, i32) {
    %c0_i32 = arith.constant 0 : i32
    %c0_i32_0 = arith.constant 0 : i32
    %c0_i32_1 = arith.constant 0 : i32
    return %arg0, %c0_i32, %c0_i32_0 : i32, i32, i32
  }
  func.func @transform_1(%arg0: i32) -> (i32, i32) {
    %c0_i32 = arith.constant 0 : i32
    %c0_i32_0 = arith.constant 0 : i32
    %c0_i32_1 = arith.constant 0 : i32
    return %c0_i32, %c0_i32_0 : i32, i32
  }
  func.func @transform_2(%arg0: i32) -> (i32, i32) {
    %c0_i32 = arith.constant 0 : i32
    %c0_i32_0 = arith.constant 0 : i32
    %c0_i32_1 = arith.constant 0 : i32
    return %c0_i32, %c0_i32_0 : i32, i32
  }
  func.func @transform_3(%arg0: i32) -> (i32, i32, i32) {
    %c0_i32 = arith.constant 0 : i32
    %c0_i32_0 = arith.constant 0 : i32
    %c0_i32_1 = arith.constant 0 : i32
    return %arg0, %c0_i32, %c0_i32_0 : i32, i32, i32
  }
}

</mosaic_0001>

<llo_original>
// kernel: conv_forward.1
$region0: #{conv_forward.1}
  #allocation0 [shape = 'u32[]', space=smem, size = 0x4, offset = 0x4, fixed_abs, tag = 'smem constant byte address 0x4 - core index']
  #allocation1 [shape = 'u32[144,128]{1,0:T(1,128)}', space=vmem, size = 0x12000, scoped, tag = 'internal scratch']
  %s0 = inlined_call_operand.vmem [shape: f32[2,36,256], index: 0, kind: input, shape index: {}]
  %s1 = inlined_call_operand.vmem [shape: f32[32,36], index: 1, kind: input, shape index: {}]
  %s2 = inlined_call_operand.vmem [shape: f32[32,1], index: 2, kind: input, shape index: {}]
  %s3 = inlined_call_operand.vmem [shape: f32[2,32,256], index: 3, kind: output, shape index: {}]
  %s4 = sld [smem:[#allocation0]]
  $region45: #{conv_forward.1} parent=0
    _
  %s6 = ssub.s32 1, %s4
  %s7 = scalar_select 0, %s6, %s4
  loop: start=0, step=1, limit=4
  $region2: #{conv_forward.1} parent=0 // loop_pre_header
    _
  $region3: #{conv_forward.1} parent=0 // loop_header
    %s9 = sphi 0, %s13
    %p10 = scmp.ge.s32.totalorder %s9, 4
    %s19 = sphi 0, %s21
    %s22 = sphi 0, %s19
    %s23 = sphi 0, %s22
    %s39 = sphi 0, %s23
    %s43 = sphi 0, %s43
    %s45 = sphi 0, %s43
    %s46 = sphi 0, %s45
    %s60 = sphi 0, %s46
    %s64 = sphi 0, %s64
    %s66 = sphi 0, %s64
    %s67 = sphi 0, %s66
    %s81 = sphi 0, %s67
    %s87 = sphi 0, %s89
    %s90 = sphi 0, %s87
    %s91 = sphi 0, %s90
    %s107 = sphi 0, %s91
  $region4: #{conv_forward.1} parent=0 // loop_header_branch
    %12 = sbr.rel (%p10) target = $region8
  $region5: #{conv_forward.1} parent=0 // loop_body
    %s14 = ssub.s32 %s9, 1
    %s15 = ssub.s32 %s9, 2
    %s16 = sadd.s32 %s9, 1
    %s17 = ssub.s32 %s9, %s16
    %p18 = scmp.eq.s32.totalorder %s17, 0
    %s20 = sadd.s32 %s19, 1
    %s21 = scalar_select %p18, %s19, %s20
    %p24 = pneg %p18
    %p25 = scmp.eq.s32.totalorder %s9, 1
    %p26 = por %p24, %p25
    %p27 = scmp.ne.s32.totalorder %s19, %s22
    %p28 = scmp.eq.s32.totalorder %s9, 0
    %p29 = por %p27, %p28
    %p30 = scmp.ne.s32.totalorder %s19, %s22
    %p31 = scmp.eq.s32.totalorder %s14, 1
    %p32 = por %p30, %p31
    %p33 = scmp.ne.s32.totalorder %s22, %s23
    %p34 = scmp.eq.s32.totalorder %s14, 0
    %p35 = por %p33, %p34
    %p36 = scmp.ne.s32.totalorder %s22, %s23
    %p37 = scmp.eq.s32.totalorder %s15, 1
    %p38 = por %p36, %p37
    %p40 = scmp.ne.s32.totalorder %s23, %s39
    %p41 = scmp.eq.s32.totalorder %s15, 0
    %p42 = por %p40, %p41
    %s44 = sadd.s32 %s43, 1
    %p47 = scmp.eq.s32.totalorder %s9, 1
    %p48 = scmp.ne.s32.totalorder %s43, %s45
    %p49 = scmp.eq.s32.totalorder %s9, 0
    %p50 = por %p48, %p49
    %p51 = scmp.ne.s32.totalorder %s43, %s45
    %p52 = scmp.eq.s32.totalorder %s14, 1
    %p53 = por %p51, %p52
    %p54 = scmp.ne.s32.totalorder %s45, %s46
    %p55 = scmp.eq.s32.totalorder %s14, 0
    %p56 = por %p54, %p55
    %p57 = scmp.ne.s32.totalorder %s45, %s46
    %p58 = scmp.eq.s32.totalorder %s15, 1
    %p59 = por %p57, %p58
    %p61 = scmp.ne.s32.totalorder %s46, %s60
    %p62 = scmp.eq.s32.totalorder %s15, 0
    %p63 = por %p61, %p62
    %s65 = sadd.s32 %s64, 1
    %p68 = scmp.eq.s32.totalorder %s9, 1
    %p69 = scmp.ne.s32.totalorder %s64, %s66
    %p70 = scmp.eq.s32.totalorder %s9, 0
    %p71 = por %p69, %p70
    %p72 = scmp.ne.s32.totalorder %s64, %s66
    %p73 = scmp.eq.s32.totalorder %s14, 1
    %p74 = por %p72, %p73
    %p75 = scmp.ne.s32.totalorder %s66, %s67
    %p76 = scmp.eq.s32.totalorder %s14, 0
    %p77 = por %p75, %p76
    %p78 = scmp.ne.s32.totalorder %s66, %s67
    %p79 = scmp.eq.s32.totalorder %s15, 1
    %p80 = por %p78, %p79
    %p82 = scmp.ne.s32.totalorder %s67, %s81
    %p83 = scmp.eq.s32.totalorder %s15, 0
    %p84 = por %p82, %p83
    %s85 = ssub.s32 %s9, %s16
    %p86 = scmp.eq.s32.totalorder %s85, 0
    %s88 = sadd.s32 %s87, 1
    %s89 = scalar_select %p86, %s87, %s88
    %p92 = pneg %p86
    %p93 = scmp.eq.s32.totalorder %s9, 1
    %p94 = por %p92, %p93
    %p95 = scmp.ne.s32.totalorder %s87, %s90
    %p96 = scmp.eq.s32.totalorder %s9, 0
    %p97 = por %p95, %p96
    %p98 = scmp.ne.s32.totalorder %s87, %s90
    %p99 = scmp.eq.s32.totalorder %s14, 1
    %p100 = por %p98, %p99
    %p101 = scmp.ne.s32.totalorder %s90, %s91
    %p102 = scmp.eq.s32.totalorder %s14, 0
    %p103 = por %p101, %p102
    %p104 = scmp.ne.s32.totalorder %s90, %s91
    %p105 = scmp.eq.s32.totalorder %s15, 1
    %p106 = por %p104, %p105
    %p108 = scmp.ne.s32.totalorder %s91, %s107
    %p109 = scmp.eq.s32.totalorder %s15, 0
    %p110 = por %p108, %p109
    %p111 = scmp.le.s32.totalorder 1, %s9
    %p112 = scmp.lt.s32.totalorder %s9, 3
    %p113 = pnand %p111, %p112
    %p114 = pneg %p113
    // Predicated region
    $region9: #{conv_forward.1} parent=5 // pred_check
      _
    $region10: #{conv_forward.1} parent=5 // pred_check_branch
      %116 = sbr.rel (%p113) target = $region12
    $region11: #{conv_forward.1} parent=5 // pred_region
      %s117 = ssub.s32 %s9, 1
      // Predicated region
      $region13: #{conv_forward.1} parent=11 // pred_check
        %p118 = pneg %p56
      $region14: #{conv_forward.1} parent=11 // pred_check_branch
        %120 = sbr.rel (%p118) target = $region16
      $region15: #{conv_forward.1} parent=11 // pred_region
        _
      $region16: #{conv_forward.1} parent=11 // pred_fallthru
        _
      // Predicated region
      $region17: #{conv_forward.1} parent=11 // pred_check
        %p121 = pneg %p77
      $region18: #{conv_forward.1} parent=11 // pred_check_branch
        %123 = sbr.rel (%p121) target = $region20
      $region19: #{conv_forward.1} parent=11 // pred_region
        _
      $region20: #{conv_forward.1} parent=11 // pred_fallthru
        _
    $region12: #{conv_forward.1} parent=5 // pred_fallthru
      _
    %p124 = scmp.lt.s32.totalorder %s9, 2
    // Predicated region
    $region21: #{conv_forward.1} parent=5 // pred_check
      %p125 = pneg %p124
    $region22: #{conv_forward.1} parent=5 // pred_check_branch
      %127 = sbr.rel (%p125) target = $region24
    $region23: #{conv_forward.1} parent=5 // pred_region
      // Predicated region
      $region25: #{conv_forward.1} parent=23 // pred_check
        %p128 = pneg %p29
      $region26: #{conv_forward.1} parent=23 // pred_check_branch
        %130 = sbr.rel (%p128) target = $region28
      $region27: #{conv_forward.1} parent=23 // pred_region
        %p131 = scmp.lt.s32.totalorder %s9, 1
        %s132 = scalar_select %p131, %s9, 1
        %s133 = smul.addr %s132, 10
        %s134 = smul.addr %s133, 8
        %s135 = scalar_lea.vmem %s0, %s134
      $region28: #{conv_forward.1} parent=23 // pred_fallthru
        _
    $region24: #{conv_forward.1} parent=5 // pred_fallthru
      _
    %p136 = scmp.le.s32.totalorder 1, %s9
    %p137 = scmp.lt.s32.totalorder %s9, 3
    %p138 = pnand %p136, %p137
    %p139 = pneg %p138
    // Predicated region
    $region29: #{conv_forward.1} parent=5 // pred_check
      _
    $region30: #{conv_forward.1} parent=5 // pred_check_branch
      %141 = sbr.rel (%p138) target = $region32
    $region31: #{conv_forward.1} parent=5 // pred_region
      %s142 = ssub.s32 %s9, 1
      %p143 = scmp.lt.s32.totalorder %s14, 1
      %s144 = scalar_select %p143, %s14, 1
      %s145 = smul.addr %s144, 10
      %s146 = smul.addr %s145, 8
      %s147 = scalar_lea.vmem %s0, %s146
      %p148 = pneg %p35
      %p149 = pneg %p32
      %p150 = pneg %p56
      %p151 = pneg %p53
      %p152 = pneg %p77
      %p153 = pneg %p74
      %p154 = pneg %p103
      %p155 = pneg %p100
      %p156 = scmp.lt.s32.totalorder %s14, 1
      %s157 = scalar_select %p156, %s14, 1
      %s158 = smul.addr %s157, 8
      %s159 = smul.addr %s158, 8
      %s160 = scalar_lea.vmem %s3, %s159
      %p161 = scmp.lt.s32.totalorder %s14, 1
      %s162 = scalar_select %p161, %s14, 1
      %s163 = smul.addr %s162, 10
      %s164 = smul.addr %s163, 8
      %s165 = scalar_lea.vmem %s0, %s164
      %p166 = scmp.lt.s32.totalorder %s14, 1
      %s167 = scalar_select %p166, %s14, 1
      %s168 = smul.addr %s167, 8
      %s169 = smul.addr %s168, 8
      %s170 = scalar_lea.vmem %s3, %s169
      %v171 = vld [vmem:[%s1] sm:$0xff]
      %v172 = vld [vmem:[%s1 + $0x8] sm:$0xff]
      %v173 = vld [vmem:[%s1 + $0x10] sm:$0xff]
      %v174 = vld [vmem:[%s1 + $0x18] sm:$0xff]
      %v175 = vld [vmem:[%s165] sm:$0xff]
      %v176 = vld [vmem:[%s165 + $0x8] sm:$0xff]
      %v177 = vld [vmem:[%s165 + $0x10] sm:$0xff]
      %v178 = vld [vmem:[%s165 + $0x18] sm:$0xff]
      %v179 = vld [vmem:[%s165 + $0x20] sm:$0xff]
      %v180 = vld [vmem:[%s165 + $0x28] sm:$0xff]
      %v181 = vld [vmem:[%s165 + $0x30] sm:$0xff]
      %v182 = vld [vmem:[%s165 + $0x38] sm:$0xff]
      %v183 = vld [vmem:[%s165 + $0x40] sm:$0xf]
      %v184 = vld [vmem:[%s165 + $0x48] sm:$0xf]
      %v185 = vld [vmem:[%s2] sm:$0xff]
      %v186 = vld [vmem:[%s2 + $0x8] sm:$0xff]
      %v187 = vld [vmem:[%s2 + $0x10] sm:$0xff]
      %v188 = vld [vmem:[%s2 + $0x18] sm:$0xff]
      %190 = vset.pattern.permute.xlu0 0
      %191 = vperm.xlu0 %190, %v185
      %v192 = vpop.permute.xlu0 %191
      %195 = vset.pattern.permute.xlu0 0
      %196 = vperm.xlu0 %195, %v186
      %v197 = vpop.permute.xlu0 %196
      %200 = vset.pattern.permute.xlu0 0
      %201 = vperm.xlu0 %200, %v187
      %v202 = vpop.permute.xlu0 %201
      %205 = vset.pattern.permute.xlu0 0
      %206 = vperm.xlu0 %205, %v188
      %v207 = vpop.permute.xlu0 %206
      %vm209 = vcmask 293888
      %v211 = vsel %vm209, %v171, 0
      %v214 = vsel %vm209, %v172, 0
      %v217 = vsel %vm209, %v173, 0
      %v220 = vsel %vm209, %v174, 0
      %vm222 = vcmask 1043456
      %v224 = vsel %vm222, %v183, 0
      %v227 = vsel %vm222, %v184, 0
      %229 = vmatprep.subr.mxu0 %v176
      %230 = vmatpush1.msra.mxu0 %v175
      %231 = vmatprep.subr.mxu0 %v178
      %232 = vmatpush1.msra.mxu0 %v177
      %233 = vmatprep.subr.mxu0 %v180
      %234 = vmatpush1.msra.mxu0 %v179
      %235 = vmatprep.subr.mxu0 %v182
      %236 = vmatpush1.msra.mxu0 %v181
      %237 = vmatprep.subr.mxu0 %v227
      %238 = vmatpush1.msra.mxu0 %v224
      %239 = vmatprep.subr.mxu0 0.0
      %240 = vmatpush1.msra.mxu0 0.0
      %241 = vmatprep.subr.mxu0 0.0
      %242 = vmatpush1.msra.mxu0 0.0
      %243 = vmatprep.subr.mxu0 0.0
      %244 = vmatpush1.msra.mxu0 0.0
      %245 = vmatprep.subr.mxu0 0.0
      %246 = vmatpush1.msra.mxu0 0.0
      %247 = vmatprep.subr.mxu0 0.0
      %248 = vmatpush1.msra.mxu0 0.0
      %249 = vmatprep.subr.mxu0 0.0
      %250 = vmatpush1.msra.mxu0 0.0
      %251 = vmatprep.subr.mxu0 0.0
      %252 = vmatpush1.msra.mxu0 0.0
      %253 = vmatprep.subr.mxu0 0.0
      %254 = vmatpush1.msra.mxu0 0.0
      %255 = vmatprep.subr.mxu0 0.0
      %256 = vmatpush1.msra.mxu0 0.0
      %257 = vmatprep.subr.mxu0 0.0
      %258 = vmatpush1.msra.mxu0 0.0
      %259 = vmatprep.subr.mxu0 0.0
      %260 = vmatpush1.msra.mxu0 0.0
      %261 = vmatprep.subr.mxu0 0.0
      %262 = vmatpush1.msra.mxu0 0.0
      %263 = vmatprep.subr.mxu0 0.0
      %264 = vmatpush1.msra.mxu0 0.0
      %265 = vmatprep.subr.mxu0 0.0
      %266 = vmatpush1.msra.mxu0 0.0
      %267 = vmatprep.subr.mxu0 0.0
      %268 = vmatpush1.msra.mxu0 0.0
      %269 = vmatprep.subr.mxu0 0.0
      %270 = vmatpush1.msra.mxu0 0.0
      %271 = vmatprep.subr.mxu0 0.0
      %272 = vmatpush1.msra.mxu0 0.0
      %273 = vmatprep.subr.mxu0 0.0
      %274 = vmatpush1.msra.mxu0 0.0
      %275 = vmatprep.subr.mxu0 0.0
      %276 = vmatpush1.msra.mxu0 0.0
      %277 = vmatprep.subr.mxu0 0.0
      %278 = vmatpush1.msra.mxu0 0.0
      %279 = vmatprep.subr.mxu0 0.0
      %280 = vmatpush1.msra.mxu0 0.0
      %281 = vmatprep.subr.mxu0 0.0
      %282 = vmatpush1.msra.mxu0 0.0
      %283 = vmatprep.subr.mxu0 0.0
      %284 = vmatpush1.msra.mxu0 0.0
      %285 = vmatprep.subr.mxu0 0.0
      %286 = vmatpush1.msra.mxu0 0.0
      %287 = vmatprep.subr.mxu0 0.0
      %288 = vmatpush1.msra.mxu0 0.0
      %289 = vmatprep.subr.mxu0 0.0
      %290 = vmatpush1.msra.mxu0 0.0
      %291 = vmatprep.subr.mxu0 0.0
      %292 = vmatpush1.msra.mxu0 0.0
      %293 = vmatprep.mubr.f32.mxu0 0.0
      %294 = vmatmul.mubr.f32.gmra.mrb[0].mxu0 %v211
      %v295 = vpop.f32.mrb[0].mxu0
      %v296 = vadd.f32 %v192, %v295
      %v297 = vpop.f32.mrb[0].mxu0
      %v298 = vadd.f32 %v192, %v297
      %299 = vmatprep.mubr.f32.mxu0 0.0
      %300 = vmatmul.mubr.f32.gmra.mrb[0].mxu0 %v214
      %v301 = vpop.f32.mrb[0].mxu0
      %v302 = vadd.f32 %v197, %v301
      %v303 = vpop.f32.mrb[0].mxu0
      %v304 = vadd.f32 %v197, %v303
      %305 = vmatprep.mubr.f32.mxu0 0.0
      %306 = vmatmul.mubr.f32.gmra.mrb[0].mxu0 %v217
      %v307 = vpop.f32.mrb[0].mxu0
      %v308 = vadd.f32 %v202, %v307
      %v309 = vpop.f32.mrb[0].mxu0
      %v310 = vadd.f32 %v202, %v309
      %311 = vmatprep.mubr.f32.mxu0 0.0
      %312 = vmatmul.mubr.f32.gmra.mrb[0].mxu0 %v220
      %v313 = vpop.f32.mrb[0].mxu0
      %v314 = vadd.f32 %v207, %v313
      %v315 = vpop.f32.mrb[0].mxu0
      %v316 = vadd.f32 %v207, %v315
      %317 = vdwg.mxu0
      %v318 = vmax.f32 %v296, 0.0
      %v319 = vmax.f32 %v298, 0.0
      %v320 = vmax.f32 %v302, 0.0
      %v321 = vmax.f32 %v304, 0.0
      %v322 = vmax.f32 %v308, 0.0
      %v323 = vmax.f32 %v310, 0.0
      %v324 = vmax.f32 %v314, 0.0
      %v325 = vmax.f32 %v316, 0.0
      %326 = vst [vmem:[%s170] sm:$0xff] %v318
      %327 = vst [vmem:[%s170 + $0x8] sm:$0xff] %v319
      %328 = vst [vmem:[%s170 + $0x10] sm:$0xff] %v320
      %329 = vst [vmem:[%s170 + $0x18] sm:$0xff] %v321
      %330 = vst [vmem:[%s170 + $0x20] sm:$0xff] %v322
      %331 = vst [vmem:[%s170 + $0x28] sm:$0xff] %v323
      %332 = vst [vmem:[%s170 + $0x30] sm:$0xff] %v324
      %333 = vst [vmem:[%s170 + $0x38] sm:$0xff] %v325
      %p334 = scmp.lt.s32.totalorder %s14, 1
      %s335 = scalar_select %p334, %s14, 1
      %s336 = smul.addr %s335, 8
      %s337 = smul.addr %s336, 8
      %s338 = scalar_lea.vmem %s3, %s337
      // Predicated region
      $region33: #{conv_forward.1} parent=31 // pred_check
        %p339 = pneg %p100
      $region34: #{conv_forward.1} parent=31 // pred_check_branch
        %341 = sbr.rel (%p339) target = $region36
      $region35: #{conv_forward.1} parent=31 // pred_region
        _
      $region36: #{conv_forward.1} parent=31 // pred_fallthru
        _
    $region32: #{conv_forward.1} parent=5 // pred_fallthru
      _
    %p342 = scmp.le.s32.totalorder 2, %s9
    // Predicated region
    $region37: #{conv_forward.1} parent=5 // pred_check
      %p343 = pneg %p342
    $region38: #{conv_forward.1} parent=5 // pred_check_branch
      %345 = sbr.rel (%p343) target = $region40
    $region39: #{conv_forward.1} parent=5 // pred_region
      %s346 = ssub.s32 %s9, 2
      // Predicated region
      $region41: #{conv_forward.1} parent=39 // pred_check
        %p347 = pneg %p106
      $region42: #{conv_forward.1} parent=39 // pred_check_branch
        %349 = sbr.rel (%p347) target = $region44
      $region43: #{conv_forward.1} parent=39 // pred_region
        %p350 = scmp.lt.s32.totalorder %s15, 1
        %s351 = scalar_select %p350, %s15, 1
        %s352 = smul.addr %s351, 8
        %s353 = smul.addr %s352, 8
        %s354 = scalar_lea.vmem %s3, %s353
      $region44: #{conv_forward.1} parent=39 // pred_fallthru
        _
    $region40: #{conv_forward.1} parent=5 // pred_fallthru
      _
  $region6: #{conv_forward.1} parent=0 // loop_footer
    %s13 = sadd.s32 1, %s9
  $region7: #{conv_forward.1} parent=0 // loop_footer_branch
    %8 = sbr.rel target = $region3
  $region8: #{conv_forward.1} parent=0 // loop_exit
    _

</llo_original>
